<compile_context>
chip_gen: v6e
topology: v6e:2x2x1
jax: 0.10.0
libtpu: 0.0.40
codegen_flags: <defaults>
</compile_context>

<pallas_src>
import functools

import jax
import jax.numpy as jnp
from jax.experimental import pallas as pl
from jax.experimental.pallas import tpu as pltpu


def _round_up(n, m):
    return ((n + m - 1) // m) * m


def _energy_net_kernel(x_ref, w1_ref, b1_ref, w2_ref, b2_ref, w3_ref, b3_ref, o_ref):
    # fc1 + tanh: x read as f32 from HBM, cast to bf16 only for the MXU;
    # f32 accumulation, f32 bias add + tanh.
    x = x_ref[...].astype(jnp.bfloat16)
    h1 = jnp.tanh(
        jnp.dot(x, w1_ref[...], preferred_element_type=jnp.float32) + b1_ref[...]
    )
    # fc2 + tanh
    h2 = jnp.tanh(
        jnp.dot(h1.astype(jnp.bfloat16), w2_ref[...],
                preferred_element_type=jnp.float32)
        + b2_ref[...]
    )
    # fc3 (no activation). w3/b3 are lane-padded to a multiple of 128 so the MXU
    # matmul is full-width; only the real out_dim columns are stored (compact
    # (tb, out_dim) writeback -> ~16x fewer HBM write bytes than a padded slab).
    out = (
        jnp.dot(h2.astype(jnp.bfloat16), w3_ref[...],
                preferred_element_type=jnp.float32)
        + b3_ref[...]
    )
    o_ref[...] = out[:, : o_ref.shape[-1]].astype(o_ref.dtype)


def _energy_net_forward_impl(x, params, *, block_tb=1024):
    """x: (B, input_shape) float32. params: dict of w1,b1,w2,b2,w3,b3.

    Weights are stored (in_features, out_features), i.e. the transpose of
    PyTorch Linear.weight, so the hot path is plain x @ W + b.
    Returns (B, output_shape) float32 with no post-kernel slice/copy.
    """
    w1, b1 = params["w1"], params["b1"]
    w2, b2 = params["w2"], params["b2"]
    w3, b3 = params["w3"], params["b3"]

    # No-ops if prepare_energy_net_params() was already applied.
    w1 = w1.astype(jnp.bfloat16)
    w2 = w2.astype(jnp.bfloat16)
    w3 = w3.astype(jnp.bfloat16)
    b1 = b1.astype(jnp.float32)
    b2 = b2.astype(jnp.float32)
    b3 = b3.astype(jnp.float32)

    B, K = x.shape
    H = w1.shape[1]
    out_dim = w3.shape[1]

    # Lane-pad only the (tiny, VMEM-resident) fc3 weight/bias so the last matmul
    # keeps a full 128-lane MXU shape; the kernel stores only the real columns.
    out_pad = _round_up(out_dim, 128)
    w3_p = jnp.pad(w3, ((0, 0), (0, out_pad - out_dim)))
    b3_p = jnp.pad(b3, ((0, 0), (0, out_pad - out_dim)))

    # Batch tile: big enough to amortize per-step overhead and give large DMA
    # bursts, never larger than the (8-rounded) batch, and capped so that large
    # batches get >= 2 grid steps (2-TC sharding on v7x via "parallel").
    tb = min(_round_up(block_tb, 8), _round_up(B, 8))
    if B > 256:
        tb = min(tb, _round_up(pl.cdiv(B, 2), 8))
    grid = (pl.cdiv(B, tb),)

    cost = pl.CostEstimate(
        flops=2 * B * (K * H + H * H + H * out_dim),
        transcendentals=2 * B * H,
        bytes_accessed=(
            B * K * 4                                   # x read (f32)
            + (w1.size + w2.size + w3_p.size) * 2       # bf16 weights (resident)
            + (b1.size + b2.size + b3_p.size) * 4       # f32 biases
            + B * out_dim * 4                           # compact f32 output write
        ),
    )

    return pl.pallas_call(
        _energy_net_kernel,
        out_shape=jax.ShapeDtypeStruct((B, out_dim), jnp.float32),
        grid=grid,
        in_specs=[
            pl.BlockSpec((tb, K), lambda i: (i, 0)),       # x tile: streams over batch
            pl.BlockSpec((K, H), lambda i: (0, 0)),         # weights/biases: VMEM-resident
            pl.BlockSpec((1, H), lambda i: (0, 0)),
            pl.BlockSpec((H, H), lambda i: (0, 0)),
            pl.BlockSpec((1, H), lambda i: (0, 0)),
            pl.BlockSpec((H, out_pad), lambda i: (0, 0)),
            pl.BlockSpec((1, out_pad), lambda i: (0, 0)),
        ],
        out_specs=pl.BlockSpec((tb, out_dim), lambda i: (i, 0)),
        compiler_params=pltpu.CompilerParams(
            dimension_semantics=("parallel",),              # 2-TC sharding on v7x
        ),
        cost_estimate=cost,
    )(x, w1, b1, w2, b2, w3_p, b3_p)


energy_net_forward = jax.jit(_energy_net_forward_impl, static_argnames=("block_tb",))


def prepare_energy_net_params(params):
    """One-time cast of the matmul weights to bf16 (biases stay f32).

    Hoists the per-call cast dispatches out of the hot path (they dominated
    launch time at small batch).
    """
    return {
        "w1": params["w1"].astype(jnp.bfloat16),
        "w2": params["w2"].astype(jnp.bfloat16),
        "w3": params["w3"].astype(jnp.bfloat16),
        "b1": params["b1"].astype(jnp.float32),
        "b2": params["b2"].astype(jnp.float32),
        "b3": params["b3"].astype(jnp.float32),
    }


def init_energy_net_params(key, input_shape, output_shape, hidden=128):
    """Deterministic init matching PyTorch Linear's U(-1/sqrt(fan_in), 1/sqrt(fan_in))."""
    keys = jax.random.split(key, 6)

    def linear(kw, kb, fan_in, fan_out):
        bound = 1.0 / (fan_in ** 0.5)
        w = jax.random.uniform(kw, (fan_in, fan_out), jnp.float32, -bound, bound)
        b = jax.random.uniform(kb, (1, fan_out), jnp.float32, -bound, bound)
        return w, b

    w1, b1 = linear(keys[0], keys[1], input_shape, hidden)
    w2, b2 = linear(keys[2], keys[3], hidden, hidden)
    w3, b3 = linear(keys[4], keys[5], hidden, output_shape)
    return {"w1": w1, "b1": b1, "w2": w2, "b2": b2, "w3": w3, "b3": b3}


if __name__ == "__main__":
    key = jax.random.PRNGKey(0)
    k_x, k_p = jax.random.split(key)

    batch = 8            # small smoke-test shapes; the batch grid pays off at large B
    input_shape = 32
    output_shape = 8

    x = jax.random.normal(k_x, (batch, input_shape), dtype=jnp.float32)
    params_f32 = init_energy_net_params(k_p, input_shape, output_shape)
    params = prepare_energy_net_params(params_f32)   # one-time bf16 weight cast

    y = energy_net_forward(x, params)
    jax.block_until_ready(y)

    # reference check in plain JAX (f32 math); loose tolerance because the kernel
    # uses bf16 matmul inputs with f32 accumulation.
    ref = jnp.tanh(x @ params_f32["w1"] + params_f32["b1"])
    ref = jnp.tanh(ref @ params_f32["w2"] + params_f32["b2"])
    ref = ref @ params_f32["w3"] + params_f32["b3"]
    assert y.shape == (batch, output_shape)
    assert jnp.allclose(y, ref, atol=5e-2, rtol=5e-2)

    print("KERNEL_OK")
</pallas_src>

<mosaic_0001>
module attributes {stable_mosaic.version = 11 : i64} {
  func.func @_energy_net_kernel(%arg0: i32, %arg1: memref<8x32xf32, #tpu.memory_space<vmem>>, %arg2: memref<32x128xbf16, #tpu.memory_space<vmem>>, %arg3: memref<1x128xf32, #tpu.memory_space<vmem>>, %arg4: memref<128x128xbf16, #tpu.memory_space<vmem>>, %arg5: memref<1x128xf32, #tpu.memory_space<vmem>>, %arg6: memref<128x128xbf16, #tpu.memory_space<vmem>>, %arg7: memref<1x128xf32, #tpu.memory_space<vmem>>, %arg8: memref<8x8xf32, #tpu.memory_space<vmem>>) attributes {dimension_semantics = [#tpu.dimension_semantics<parallel>], iteration_bounds = array<i64: 1>, scalar_prefetch = 0 : i64, scratch_operands = 0 : i64, tpu.core_type = #tpu.core_type<tc>, window_params = [{transform_indices = @transform_0, window_bounds = array<i64: 8, 32>}, {pipeline_mode = #tpu.pipeline_mode<synchronous>, transform_indices = @transform_1, window_bounds = array<i64: 32, 128>}, {pipeline_mode = #tpu.pipeline_mode<synchronous>, transform_indices = @transform_2, window_bounds = array<i64: 1, 128>}, {pipeline_mode = #tpu.pipeline_mode<synchronous>, transform_indices = @transform_3, window_bounds = array<i64: 128, 128>}, {pipeline_mode = #tpu.pipeline_mode<synchronous>, transform_indices = @transform_4, window_bounds = array<i64: 1, 128>}, {pipeline_mode = #tpu.pipeline_mode<synchronous>, transform_indices = @transform_5, window_bounds = array<i64: 128, 128>}, {pipeline_mode = #tpu.pipeline_mode<synchronous>, transform_indices = @transform_6, window_bounds = array<i64: 1, 128>}, {transform_indices = @transform_7, window_bounds = array<i64: 8, 8>}]} {
    %c0 = arith.constant 0 : index
    %c0_0 = arith.constant 0 : index
    %0 = vector.load %arg1[%c0, %c0_0] : memref<8x32xf32, #tpu.memory_space<vmem>>, vector<8x32xf32>
    %1 = arith.truncf %0 : vector<8x32xf32> to vector<8x32xbf16>
    %c0_1 = arith.constant 0 : index
    %c0_2 = arith.constant 0 : index
    %2 = vector.load %arg2[%c0_1, %c0_2] : memref<32x128xbf16, #tpu.memory_space<vmem>>, vector<32x128xbf16>
    %cst = arith.constant dense<0.000000e+00> : vector<8x128xf32>
    %3 = tpu.matmul %1, %2, %cst {dimension_numbers = #tpu.dot_dimension_numbers<[1], [0], [0], [1], [0, 0, 1, 1], [], []>} : vector<8x32xbf16>, vector<32x128xbf16>, vector<8x128xf32> -> vector<8x128xf32>
    %c0_3 = arith.constant 0 : index
    %c0_4 = arith.constant 0 : index
    %4 = vector.load %arg3[%c0_3, %c0_4] : memref<1x128xf32, #tpu.memory_space<vmem>>, vector<1x128xf32>
    %5 = vector.broadcast %4 : vector<1x128xf32> to vector<8x128xf32>
    %6 = arith.addf %3, %5 : vector<8x128xf32>
    %7 = math.tanh %6 : vector<8x128xf32>
    %8 = arith.truncf %7 : vector<8x128xf32> to vector<8x128xbf16>
    %c0_5 = arith.constant 0 : index
    %c0_6 = arith.constant 0 : index
    %9 = vector.load %arg4[%c0_5, %c0_6] : memref<128x128xbf16, #tpu.memory_space<vmem>>, vector<128x128xbf16>
    %cst_7 = arith.constant dense<0.000000e+00> : vector<8x128xf32>
    %10 = tpu.matmul %8, %9, %cst_7 {dimension_numbers = #tpu.dot_dimension_numbers<[1], [0], [0], [1], [0, 0, 1, 1], [], []>} : vector<8x128xbf16>, vector<128x128xbf16>, vector<8x128xf32> -> vector<8x128xf32>
    %c0_8 = arith.constant 0 : index
    %c0_9 = arith.constant 0 : index
    %11 = vector.load %arg5[%c0_8, %c0_9] : memref<1x128xf32, #tpu.memory_space<vmem>>, vector<1x128xf32>
    %12 = vector.broadcast %11 : vector<1x128xf32> to vector<8x128xf32>
    %13 = arith.addf %10, %12 : vector<8x128xf32>
    %14 = math.tanh %13 : vector<8x128xf32>
    %15 = arith.truncf %14 : vector<8x128xf32> to vector<8x128xbf16>
    %c0_10 = arith.constant 0 : index
    %c0_11 = arith.constant 0 : index
    %16 = vector.load %arg6[%c0_10, %c0_11] : memref<128x128xbf16, #tpu.memory_space<vmem>>, vector<128x128xbf16>
    %cst_12 = arith.constant dense<0.000000e+00> : vector<8x128xf32>
    %17 = tpu.matmul %15, %16, %cst_12 {dimension_numbers = #tpu.dot_dimension_numbers<[1], [0], [0], [1], [0, 0, 1, 1], [], []>} : vector<8x128xbf16>, vector<128x128xbf16>, vector<8x128xf32> -> vector<8x128xf32>
    %c0_13 = arith.constant 0 : index
    %c0_14 = arith.constant 0 : index
    %18 = vector.load %arg7[%c0_13, %c0_14] : memref<1x128xf32, #tpu.memory_space<vmem>>, vector<1x128xf32>
    %19 = vector.broadcast %18 : vector<1x128xf32> to vector<8x128xf32>
    %20 = arith.addf %17, %19 : vector<8x128xf32>
    %21 = vector.extract_strided_slice %20 {offsets = [0, 0], sizes = [8, 8], strides = [1, 1]} : vector<8x128xf32> to vector<8x8xf32>
    %c0_15 = arith.constant 0 : index
    %c0_16 = arith.constant 0 : index
    %22 = vector.load %arg8[%c0_15, %c0_16] : memref<8x8xf32, #tpu.memory_space<vmem>>, vector<8x8xf32>
    tpu.vector_store %arg8[%c0_15, %c0_16], %21 {strides = array<i32>} : memref<8x8xf32, #tpu.memory_space<vmem>>, vector<8x8xf32>,
    return
  }
  func.func @transform_0(%arg0: i32) -> (i32, i32) {
    %c0_i32 = arith.constant 0 : i32
    %c0_i32_0 = arith.constant 0 : i32
    return %arg0, %c0_i32 : i32, i32
  }
  func.func @transform_1(%arg0: i32) -> (i32, i32) {
    %c0_i32 = arith.constant 0 : i32
    %c0_i32_0 = arith.constant 0 : i32
    %c0_i32_1 = arith.constant 0 : i32
    return %c0_i32, %c0_i32_0 : i32, i32
  }
  func.func @transform_2(%arg0: i32) -> (i32, i32) {
    %c0_i32 = arith.constant 0 : i32
    %c0_i32_0 = arith.constant 0 : i32
    %c0_i32_1 = arith.constant 0 : i32
    return %c0_i32, %c0_i32_0 : i32, i32
  }
  func.func @transform_3(%arg0: i32) -> (i32, i32) {
    %c0_i32 = arith.constant 0 : i32
    %c0_i32_0 = arith.constant 0 : i32
    %c0_i32_1 = arith.constant 0 : i32
    return %c0_i32, %c0_i32_0 : i32, i32
  }
  func.func @transform_4(%arg0: i32) -> (i32, i32) {
    %c0_i32 = arith.constant 0 : i32
    %c0_i32_0 = arith.constant 0 : i32
    %c0_i32_1 = arith.constant 0 : i32
    return %c0_i32, %c0_i32_0 : i32, i32
  }
  func.func @transform_5(%arg0: i32) -> (i32, i32) {
    %c0_i32 = arith.constant 0 : i32
    %c0_i32_0 = arith.constant 0 : i32
    %c0_i32_1 = arith.constant 0 : i32
    return %c0_i32, %c0_i32_0 : i32, i32
  }
  func.func @transform_6(%arg0: i32) -> (i32, i32) {
    %c0_i32 = arith.constant 0 : i32
    %c0_i32_0 = arith.constant 0 : i32
    %c0_i32_1 = arith.constant 0 : i32
    return %c0_i32, %c0_i32_0 : i32, i32
  }
  func.func @transform_7(%arg0: i32) -> (i32, i32) {
    %c0_i32 = arith.constant 0 : i32
    %c0_i32_0 = arith.constant 0 : i32
    return %arg0, %c0_i32 : i32, i32
  }
}

</mosaic_0001>

<llo_original>
// kernel: _energy_net_forward_impl.1
$region0: #{_energy_net_forward_impl.1}
  #allocation0 [shape = 'u32[]', space=smem, size = 0x4, offset = 0x4, fixed_abs, tag = 'smem constant byte address 0x4 - core index']
  #allocation1 [shape = 'u32[144,128]{1,0:T(1,128)}', space=vmem, size = 0x12000, scoped, tag = 'internal scratch']
  %s0 = inlined_call_operand.vmem [shape: f32[8,32], index: 0, kind: input, shape index: {}]
  %s1 = inlined_call_operand.vmem [shape: bf16[32,128], index: 1, kind: input, shape index: {}]
  %s2 = inlined_call_operand.vmem [shape: f32[1,128], index: 2, kind: input, shape index: {}]
  %s3 = inlined_call_operand.vmem [shape: bf16[128,128], index: 3, kind: input, shape index: {}]
  %s4 = inlined_call_operand.vmem [shape: f32[1,128], index: 4, kind: input, shape index: {}]
  %s5 = inlined_call_operand.vmem [shape: bf16[128,128], index: 5, kind: input, shape index: {}]
  %s6 = inlined_call_operand.vmem [shape: f32[1,128], index: 6, kind: input, shape index: {}]
  %s7 = inlined_call_operand.hbm [shape: f32[8,8], index: 7, kind: output, shape index: {}]
  %s8 = sld [smem:[#allocation0]]
  $region38: #{_energy_net_forward_impl.1} parent=0
    _
  %s10 = ssub.s32 1, %s8
  %s11 = scalar_select 0, %s10, %s8
  $region1: #{_energy_net_forward_impl.1} parent=0
    #allocation2 [shape = 'u8[4096]{0}', space=vmem, size = 0x1000, scoped, tag = 'output window, operand 0, single buffered']
    #allocation3 [shape = 's32[1]{0}', space=sflag, size = 0x4, scoped, tag = 'scoped memory for _energy_net_forward_impl.1']
    %12 = vsyncpa [#allocation3], 0
    // Predicated region
    $region2: #{_energy_net_forward_impl.1} parent=1 // pred_check
      _
    $region3: #{_energy_net_forward_impl.1} parent=1 // pred_check_branch
      %14 = sbr.rel (0) target = $region5
    $region4: #{_energy_net_forward_impl.1} parent=1 // pred_region
      _
    $region5: #{_energy_net_forward_impl.1} parent=1 // pred_fallthru
      _
    // Predicated region
    $region6: #{_energy_net_forward_impl.1} parent=1 // pred_check
      _
    $region7: #{_energy_net_forward_impl.1} parent=1 // pred_check_branch
      %16 = sbr.rel (0) target = $region9
    $region8: #{_energy_net_forward_impl.1} parent=1 // pred_region
      _
    $region9: #{_energy_net_forward_impl.1} parent=1 // pred_fallthru
      _
    // Predicated region
    $region10: #{_energy_net_forward_impl.1} parent=1 // pred_check
      _
    $region11: #{_energy_net_forward_impl.1} parent=1 // pred_check_branch
      %18 = sbr.rel (0) target = $region13
    $region12: #{_energy_net_forward_impl.1} parent=1 // pred_region
      _
    $region13: #{_energy_net_forward_impl.1} parent=1 // pred_fallthru
      _
    // Predicated region
    $region14: #{_energy_net_forward_impl.1} parent=1 // pred_check
      _
    $region15: #{_energy_net_forward_impl.1} parent=1 // pred_check_branch
      %20 = sbr.rel (0) target = $region17
    $region16: #{_energy_net_forward_impl.1} parent=1 // pred_region
      _
    $region17: #{_energy_net_forward_impl.1} parent=1 // pred_fallthru
      _
    // Predicated region
    $region18: #{_energy_net_forward_impl.1} parent=1 // pred_check
      _
    $region19: #{_energy_net_forward_impl.1} parent=1 // pred_check_branch
      %22 = sbr.rel (0) target = $region21
    $region20: #{_energy_net_forward_impl.1} parent=1 // pred_region
      _
    $region21: #{_energy_net_forward_impl.1} parent=1 // pred_fallthru
      _
    // Predicated region
    $region22: #{_energy_net_forward_impl.1} parent=1 // pred_check
      _
    $region23: #{_energy_net_forward_impl.1} parent=1 // pred_check_branch
      %24 = sbr.rel (0) target = $region25
    $region24: #{_energy_net_forward_impl.1} parent=1 // pred_region
      _
    $region25: #{_energy_net_forward_impl.1} parent=1 // pred_fallthru
      _
    // Predicated region
    $region26: #{_energy_net_forward_impl.1} parent=1 // pred_check
      _
    $region27: #{_energy_net_forward_impl.1} parent=1 // pred_check_branch
      %26 = sbr.rel (0) target = $region29
    $region28: #{_energy_net_forward_impl.1} parent=1 // pred_region
      _
    $region29: #{_energy_net_forward_impl.1} parent=1 // pred_fallthru
      _
    %v28 = vld [vmem:[%s0] sm:$0xff]
    %v29 = vpack.c.bf16 %v28, %v28
    %v30 = vld [vmem:[%s1] sm:$0xf]
    %v31 = vld [vmem:[%s1 + $0x4] sm:$0xf]
    %v32 = vld [vmem:[%s1 + $0x8] sm:$0xf]
    %v33 = vld [vmem:[%s1 + $0xc] sm:$0xf]
    %v34 = vld [vmem:[%s2] sm:$0x1]
    %v36 = vlaneseq
    %v37 = vshrl.u32 %v36, 7
    %v38 = vsub.s32 0, %v37
    %v39 = vrot.slane %v34, %v38
    %v45 = vunpack.c.l.b16 %v30
    %v46 = vunpack.c.l.b16 %v31
    %v47 = vunpack.c.l.b16 %v32
    %v48 = vunpack.c.l.b16 %v33
    %v49 = vpack.c.b16 %v46, %v45
    %v50 = vpack.c.b16 %v48, %v47
    %vm53 = vcmask 261120
    %v55 = vsel %vm53, %v29, 0
    %57 = vmatprep.subr.bf16.mxu0 0
    %58 = vmatpush1.bf16.msra.mxu0 0
    %59 = vmatprep.subr.bf16.mxu0 0
    %60 = vmatpush1.bf16.msra.mxu0 0
    %61 = vmatprep.subr.bf16.mxu0 0
    %62 = vmatpush1.bf16.msra.mxu0 0
    %63 = vmatprep.subr.bf16.mxu0 0
    %64 = vmatpush1.bf16.msra.mxu0 0
    %65 = vmatprep.subr.bf16.mxu0 0
    %66 = vmatpush1.bf16.msra.mxu0 0
    %67 = vmatprep.subr.bf16.mxu0 0
    %68 = vmatpush1.bf16.msra.mxu0 0
    %69 = vmatprep.subr.bf16.mxu0 0
    %70 = vmatpush1.bf16.msra.mxu0 %v50
    %71 = vmatprep.subr.bf16.mxu0 0
    %72 = vmatpush1.bf16.msra.mxu0 %v49
    %73 = vmatprep.subr.bf16.mxu0 0
    %74 = vmatpush2.bf16.msra.mxu0 0
    %75 = vmatprep.subr.bf16.mxu0 0
    %76 = vmatpush2.bf16.msra.mxu0 0
    %77 = vmatprep.subr.bf16.mxu0 0
    %78 = vmatpush2.bf16.msra.mxu0 0
    %79 = vmatprep.subr.bf16.mxu0 0
    %80 = vmatpush2.bf16.msra.mxu0 0
    %81 = vmatprep.subr.bf16.mxu0 0
    %82 = vmatpush2.bf16.msra.mxu0 0
    %83 = vmatprep.subr.bf16.mxu0 0
    %84 = vmatpush2.bf16.msra.mxu0 0
    %85 = vmatprep.subr.bf16.mxu0 0
    %86 = vmatpush2.bf16.msra.mxu0 0
    %87 = vmatprep.subr.bf16.mxu0 0
    %88 = vmatpush2.bf16.msra.mxu0 0
    %89 = vmatprep.mubr.bf16.mxu0 0
    %90 = vmatmul.mubr.bf16.gmra.mxu0 %v55
    %v91 = vpop.f32.mrf.mxu0
    %v92 = vadd.f32 %v39, %v91
    %v93 = vpop.f32.mrf.mxu0
    %v94 = vpop.f32.mrf.mxu0
    %v95 = vpop.f32.mrf.mxu0
    %96 = vdwg.mxu0
    %v97 = vtanh.pop %v92
    %v98 = vpack.c.bf16 %v97, %v97
    %v99 = vld [vmem:[%s3] sm:$0xf]
    %v100 = vld [vmem:[%s3 + $0x4] sm:$0xf]
    %v101 = vld [vmem:[%s3 + $0x8] sm:$0xf]
    %v102 = vld [vmem:[%s3 + $0xc] sm:$0xf]
    %v103 = vld [vmem:[%s3 + $0x10] sm:$0xf]
    %v104 = vld [vmem:[%s3 + $0x14] sm:$0xf]
    %v105 = vld [vmem:[%s3 + $0x18] sm:$0xf]
    %v106 = vld [vmem:[%s3 + $0x1c] sm:$0xf]
    %v107 = vld [vmem:[%s3 + $0x20] sm:$0xf]
    %v108 = vld [vmem:[%s3 + $0x24] sm:$0xf]
    %v109 = vld [vmem:[%s3 + $0x28] sm:$0xf]
    %v110 = vld [vmem:[%s3 + $0x2c] sm:$0xf]
    %v111 = vld [vmem:[%s3 + $0x30] sm:$0xf]
    %v112 = vld [vmem:[%s3 + $0x34] sm:$0xf]
    %v113 = vld [vmem:[%s3 + $0x38] sm:$0xf]
    %v114 = vld [vmem:[%s3 + $0x3c] sm:$0xf]
    %v115 = vld [vmem:[%s4] sm:$0x1]
    %v117 = vlaneseq
    %v118 = vshrl.u32 %v117, 7
    %v119 = vsub.s32 0, %v118
    %v120 = vrot.slane %v115, %v119
    %v138 = vunpack.c.l.b16 %v99
    %v139 = vunpack.c.l.b16 %v100
    %v140 = vunpack.c.l.b16 %v101
    %v141 = vunpack.c.l.b16 %v102
    %v142 = vunpack.c.l.b16 %v103
    %v143 = vunpack.c.l.b16 %v104
    %v144 = vunpack.c.l.b16 %v105
    %v145 = vunpack.c.l.b16 %v106
    %v146 = vunpack.c.l.b16 %v107
    %v147 = vunpack.c.l.b16 %v108
    %v148 = vunpack.c.l.b16 %v109
    %v149 = vunpack.c.l.b16 %v110
    %v150 = vunpack.c.l.b16 %v111
    %v151 = vunpack.c.l.b16 %v112
    %v152 = vunpack.c.l.b16 %v113
    %v153 = vunpack.c.l.b16 %v114
    %v154 = vpack.c.b16 %v139, %v138
    %v155 = vpack.c.b16 %v141, %v140
    %v156 = vpack.c.b16 %v143, %v142
    %v157 = vpack.c.b16 %v145, %v144
    %v158 = vpack.c.b16 %v147, %v146
    %v159 = vpack.c.b16 %v149, %v148
    %v160 = vpack.c.b16 %v151, %v150
    %v161 = vpack.c.b16 %v153, %v152
    %170 = vmatprep.subr.bf16.mxu0 0
    %171 = vmatpush1.bf16.msra.mxu0 %v161
    %172 = vmatprep.subr.bf16.mxu0 0
    %173 = vmatpush1.bf16.msra.mxu0 %v160
    %174 = vmatprep.subr.bf16.mxu0 0
    %175 = vmatpush1.bf16.msra.mxu0 %v159
    %176 = vmatprep.subr.bf16.mxu0 0
    %177 = vmatpush1.bf16.msra.mxu0 %v158
    %178 = vmatprep.subr.bf16.mxu0 0
    %179 = vmatpush1.bf16.msra.mxu0 %v157
    %180 = vmatprep.subr.bf16.mxu0 0
    %181 = vmatpush1.bf16.msra.mxu0 %v156
    %182 = vmatprep.subr.bf16.mxu0 0
    %183 = vmatpush1.bf16.msra.mxu0 %v155
    %184 = vmatprep.subr.bf16.mxu0 0
    %185 = vmatpush1.bf16.msra.mxu0 %v154
    %186 = vmatprep.subr.bf16.mxu0 0
    %187 = vmatpush2.bf16.msra.mxu0 0
    %188 = vmatprep.subr.bf16.mxu0 0
    %189 = vmatpush2.bf16.msra.mxu0 0
    %190 = vmatprep.subr.bf16.mxu0 0
    %191 = vmatpush2.bf16.msra.mxu0 0
    %192 = vmatprep.subr.bf16.mxu0 0
    %193 = vmatpush2.bf16.msra.mxu0 0
    %194 = vmatprep.subr.bf16.mxu0 0
    %195 = vmatpush2.bf16.msra.mxu0 0
    %196 = vmatprep.subr.bf16.mxu0 0
    %197 = vmatpush2.bf16.msra.mxu0 0
    %198 = vmatprep.subr.bf16.mxu0 0
    %199 = vmatpush2.bf16.msra.mxu0 0
    %200 = vmatprep.subr.bf16.mxu0 0
    %201 = vmatpush2.bf16.msra.mxu0 0
    %202 = vmatprep.mubr.bf16.mxu0 0
    %203 = vmatmul.mubr.bf16.gmra.mxu0 %v98
    %v204 = vpop.f32.mrf.mxu0
    %v205 = vadd.f32 %v120, %v204
    %v206 = vpop.f32.mrf.mxu0
    %v207 = vpop.f32.mrf.mxu0
    %v208 = vpop.f32.mrf.mxu0
    %209 = vdwg.mxu0
    %v210 = vtanh.pop %v205
    %v211 = vpack.c.bf16 %v210, %v210
    %v212 = vld [vmem:[%s5] sm:$0xf]
    %v213 = vld [vmem:[%s5 + $0x4] sm:$0xf]
    %v214 = vld [vmem:[%s5 + $0x8] sm:$0xf]
    %v215 = vld [vmem:[%s5 + $0xc] sm:$0xf]
    %v216 = vld [vmem:[%s5 + $0x10] sm:$0xf]
    %v217 = vld [vmem:[%s5 + $0x14] sm:$0xf]
    %v218 = vld [vmem:[%s5 + $0x18] sm:$0xf]
    %v219 = vld [vmem:[%s5 + $0x1c] sm:$0xf]
    %v220 = vld [vmem:[%s5 + $0x20] sm:$0xf]
    %v221 = vld [vmem:[%s5 + $0x24] sm:$0xf]
    %v222 = vld [vmem:[%s5 + $0x28] sm:$0xf]
    %v223 = vld [vmem:[%s5 + $0x2c] sm:$0xf]
    %v224 = vld [vmem:[%s5 + $0x30] sm:$0xf]
    %v225 = vld [vmem:[%s5 + $0x34] sm:$0xf]
    %v226 = vld [vmem:[%s5 + $0x38] sm:$0xf]
    %v227 = vld [vmem:[%s5 + $0x3c] sm:$0xf]
    %v228 = vld [vmem:[%s6] sm:$0x1]
    %v230 = vlaneseq
    %v231 = vshrl.u32 %v230, 7
    %v232 = vsub.s32 0, %v231
    %v233 = vrot.slane %v228, %v232
    %v251 = vunpack.c.l.b16 %v212
    %v252 = vunpack.c.l.b16 %v213
    %v253 = vunpack.c.l.b16 %v214
    %v254 = vunpack.c.l.b16 %v215
    %v255 = vunpack.c.l.b16 %v216
    %v256 = vunpack.c.l.b16 %v217
    %v257 = vunpack.c.l.b16 %v218
    %v258 = vunpack.c.l.b16 %v219
    %v259 = vunpack.c.l.b16 %v220
    %v260 = vunpack.c.l.b16 %v221
    %v261 = vunpack.c.l.b16 %v222
    %v262 = vunpack.c.l.b16 %v223
    %v263 = vunpack.c.l.b16 %v224
    %v264 = vunpack.c.l.b16 %v225
    %v265 = vunpack.c.l.b16 %v226
    %v266 = vunpack.c.l.b16 %v227
    %v267 = vpack.c.b16 %v252, %v251
    %v268 = vpack.c.b16 %v254, %v253
    %v269 = vpack.c.b16 %v256, %v255
    %v270 = vpack.c.b16 %v258, %v257
    %v271 = vpack.c.b16 %v260, %v259
    %v272 = vpack.c.b16 %v262, %v261
    %v273 = vpack.c.b16 %v264, %v263
    %v274 = vpack.c.b16 %v266, %v265
    %283 = vmatprep.subr.bf16.mxu0 0
    %284 = vmatpush1.bf16.msra.mxu0 %v274
    %285 = vmatprep.subr.bf16.mxu0 0
    %286 = vmatpush1.bf16.msra.mxu0 %v273
    %287 = vmatprep.subr.bf16.mxu0 0
    %288 = vmatpush1.bf16.msra.mxu0 %v272
    %289 = vmatprep.subr.bf16.mxu0 0
    %290 = vmatpush1.bf16.msra.mxu0 %v271
    %291 = vmatprep.subr.bf16.mxu0 0
    %292 = vmatpush1.bf16.msra.mxu0 %v270
    %293 = vmatprep.subr.bf16.mxu0 0
    %294 = vmatpush1.bf16.msra.mxu0 %v269
    %295 = vmatprep.subr.bf16.mxu0 0
    %296 = vmatpush1.bf16.msra.mxu0 %v268
    %297 = vmatprep.subr.bf16.mxu0 0
    %298 = vmatpush1.bf16.msra.mxu0 %v267
    %299 = vmatprep.subr.bf16.mxu0 0
    %300 = vmatpush2.bf16.msra.mxu0 0
    %301 = vmatprep.subr.bf16.mxu0 0
    %302 = vmatpush2.bf16.msra.mxu0 0
    %303 = vmatprep.subr.bf16.mxu0 0
    %304 = vmatpush2.bf16.msra.mxu0 0
    %305 = vmatprep.subr.bf16.mxu0 0
    %306 = vmatpush2.bf16.msra.mxu0 0
    %307 = vmatprep.subr.bf16.mxu0 0
    %308 = vmatpush2.bf16.msra.mxu0 0
    %309 = vmatprep.subr.bf16.mxu0 0
    %310 = vmatpush2.bf16.msra.mxu0 0
    %311 = vmatprep.subr.bf16.mxu0 0
    %312 = vmatpush2.bf16.msra.mxu0 0
    %313 = vmatprep.subr.bf16.mxu0 0
    %314 = vmatpush2.bf16.msra.mxu0 0
    %315 = vmatprep.mubr.bf16.mxu0 0
    %316 = vmatmul.mubr.bf16.gmra.mxu0 %v211
    %v317 = vpop.f32.mrf.mxu0
    %v318 = vadd.f32 %v233, %v317
    %v319 = vpop.f32.mrf.mxu0
    %v320 = vpop.f32.mrf.mxu0
    %v321 = vpop.f32.mrf.mxu0
    %322 = vdwg.mxu0
    %vm323 = vcmask 64512
    %324 = vst.msk [vmem:[#allocation2] sm:$0xff] %vm323, %v318
    // Predicated region
    $region30: #{_energy_net_forward_impl.1} parent=1 // pred_check
      _
    $region31: #{_energy_net_forward_impl.1} parent=1 // pred_check_branch
      %326 = sbr.rel (0) target = $region33
    $region32: #{_energy_net_forward_impl.1} parent=1 // pred_region
      %s328 = ssub.s32 128, 128
      %329 = vsyncadd [#allocation3], %s328
      %s331 = sshll.u32 [#allocation2], 4
      %s332 = int_to_ptr.vmem [resolvable:$true] %s331
      %334 = dma.vmem_to_hbm [thread:$0]  %s332, 128, %s7, [#allocation3]
    $region33: #{_energy_net_forward_impl.1} parent=1 // pred_fallthru
      _
    // Predicated region
    $region34: #{_energy_net_forward_impl.1} parent=1 // pred_check
      _
    $region35: #{_energy_net_forward_impl.1} parent=1 // pred_check_branch
      %336 = sbr.rel (0) target = $region37
    $region36: #{_energy_net_forward_impl.1} parent=1 // pred_region
      %337 = dma.done [#allocation3], 128
    $region37: #{_energy_net_forward_impl.1} parent=1 // pred_fallthru
      _
    %338 = vsyncpa [#allocation3], 1

</llo_original>
